<compile_context>
chip_gen: v5e
topology: v5e:2x2
jax: 0.10.0
libtpu: 0.0.40
codegen_flags: <defaults>
</compile_context>

<pallas_src>
import jax
import jax.numpy as jnp
from jax.experimental import pallas as pl
from jax.experimental.pallas import tpu as pltpu


_LANE_COLS = 512        # lane-dense last dim (large multiple of 128 -> unmasked vst)
_MAX_TILE_ROWS = 512    # 512*512*4B = 1 MiB per block; comfortable on v5e/v6e/v7x VMEM


def _linear_sigmoid_kernel(wb_ref, x_ref, o_ref):
    # wb_ref: SMEM (2,) holding [weight, bias] scalars -> scalar path, free broadcast.
    w = wb_ref[0]
    b = wb_ref[1]
    # Degenerate Linear(1,1): scalar multiply-add on the VPU, sigmoid on the EUP.
    o_ref[...] = jax.nn.sigmoid(x_ref[...] * w + b)


@jax.jit
def linear_sigmoid(x, weight, bias):
    """y = sigmoid(x @ weight.T + bias) for nn.Linear(1, 1).  x: (..., 1)."""
    orig_shape = x.shape
    dtype = x.dtype
    n = x.size                      # last dim is 1 -> elementwise over all elements

    flat = x.reshape(-1)

    # Lane-dense 2D layout, padded so the grid divides the array evenly.
    rows_needed = pl.cdiv(n, _LANE_COLS)
    if rows_needed <= _MAX_TILE_ROWS:
        tile_rows = max(rows_needed, 1)   # single block == full array extent (legal)
        grid_rows = 1
    else:
        tile_rows = _MAX_TILE_ROWS        # divisible by 8 -> legal sublane tiling
        grid_rows = pl.cdiv(rows_needed, tile_rows)
    total_rows = tile_rows * grid_rows
    padded_len = total_rows * _LANE_COLS

    flat = jnp.pad(flat, (0, padded_len - n))
    x2d = flat.reshape(total_rows, _LANE_COLS)

    # Pack scalar params for SMEM (no VMEM tiles, no DMAs).
    wb = jnp.concatenate([weight.reshape(-1), bias.reshape(-1)]).astype(dtype)

    out2d = pl.pallas_call(
        _linear_sigmoid_kernel,
        out_shape=jax.ShapeDtypeStruct((total_rows, _LANE_COLS), dtype),
        grid=(grid_rows,),
        in_specs=[
            pl.BlockSpec(memory_space=pltpu.MemorySpace.SMEM),        # [w, b]
            pl.BlockSpec((tile_rows, _LANE_COLS), lambda i: (i, 0)),  # x tile
        ],
        out_specs=pl.BlockSpec((tile_rows, _LANE_COLS), lambda i: (i, 0)),
        compiler_params=pltpu.CompilerParams(
            dimension_semantics=("parallel",)),   # batch-parallel (2 TCs on v7x)
    )(wb, x2d)

    return out2d.reshape(-1)[:n].reshape(orig_shape)


if __name__ == "__main__":
    key = jax.random.PRNGKey(0)
    kx, kw, kb, kx2 = jax.random.split(key, 4)

    # Small shapes consistent with nn.Linear(1, 1): batch of 8 samples, 1 feature.
    x = jax.random.normal(kx, (8, 1), dtype=jnp.float32)
    weight = jax.random.normal(kw, (1, 1), dtype=jnp.float32) * 0.5
    bias = jax.random.normal(kb, (1,), dtype=jnp.float32) * 0.1

    y = linear_sigmoid(x, weight, bias)
    jax.block_until_ready(y)

    # Reference check in plain JAX (same math as torch.sigmoid(linear(x))).
    y_ref = jax.nn.sigmoid(x @ weight.T + bias)
    assert y.shape == y_ref.shape
    assert jnp.allclose(y, y_ref, atol=1e-5, rtol=1e-5), "mismatch vs reference (N=8)"

    # Also exercise the multi-block pipelined grid path (grid_rows > 1).
    x_big = jax.random.normal(kx2, (300_000, 1), dtype=jnp.float32)
    y_big = linear_sigmoid(x_big, weight, bias)
    jax.block_until_ready(y_big)
    y_big_ref = jax.nn.sigmoid(x_big @ weight.T + bias)
    assert jnp.allclose(y_big, y_big_ref, atol=1e-5, rtol=1e-5), \
        "mismatch vs reference (large N)"

    print("KERNEL_OK")
</pallas_src>

<mosaic_0001>
module attributes {stable_mosaic.version = 11 : i64} {
  func.func @_linear_sigmoid_kernel(%arg0: i32, %arg1: memref<2xf32, #tpu.memory_space<smem>>, %arg2: memref<1x512xf32, #tpu.memory_space<vmem>>, %arg3: memref<1x512xf32, #tpu.memory_space<vmem>>) attributes {dimension_semantics = [#tpu.dimension_semantics<parallel>], iteration_bounds = array<i64: 1>, scalar_prefetch = 0 : i64, scratch_operands = 0 : i64, tpu.core_type = #tpu.core_type<tc>, window_params = [{transform_indices = @transform_0, window_bounds = array<i64: 2>}, {transform_indices = @transform_1, window_bounds = array<i64: 1, 512>}, {transform_indices = @transform_2, window_bounds = array<i64: 1, 512>}]} {
    %c0 = arith.constant 0 : index
    %0 = memref.load %arg1[%c0] : memref<2xf32, #tpu.memory_space<smem>>
    %c1 = arith.constant 1 : index
    %1 = memref.load %arg1[%c1] : memref<2xf32, #tpu.memory_space<smem>>
    %c0_0 = arith.constant 0 : index
    %c0_1 = arith.constant 0 : index
    %2 = vector.load %arg2[%c0_0, %c0_1] : memref<1x512xf32, #tpu.memory_space<vmem>>, vector<1x512xf32>
    %3 = vector.broadcast %0 : f32 to vector<1x512xf32>
    %4 = arith.mulf %2, %3 : vector<1x512xf32>
    %5 = vector.broadcast %1 : f32 to vector<1x512xf32>
    %6 = arith.addf %4, %5 : vector<1x512xf32>
    %7 = arith.negf %6 : vector<1x512xf32>
    %8 = math.exp %7 : vector<1x512xf32>
    %cst = arith.constant 1.000000e+00 : f32
    %9 = vector.broadcast %cst : f32 to vector<1x512xf32>
    %10 = arith.addf %9, %8 : vector<1x512xf32>
    %11 = arith.divf %9, %10 : vector<1x512xf32>
    %c0_2 = arith.constant 0 : index
    %c0_3 = arith.constant 0 : index
    %12 = vector.load %arg3[%c0_2, %c0_3] : memref<1x512xf32, #tpu.memory_space<vmem>>, vector<1x512xf32>
    tpu.vector_store %arg3[%c0_2, %c0_3], %11 {strides = array<i32>} : memref<1x512xf32, #tpu.memory_space<vmem>>, vector<1x512xf32>,
    return
  }
  func.func @transform_0(%arg0: i32) -> i32 {
    %c0_i32 = arith.constant 0 : i32
    %c0_i32_0 = arith.constant 0 : i32
    return %c0_i32 : i32
  }
  func.func @transform_1(%arg0: i32) -> (i32, i32) {
    %c0_i32 = arith.constant 0 : i32
    %c0_i32_0 = arith.constant 0 : i32
    return %arg0, %c0_i32 : i32, i32
  }
  func.func @transform_2(%arg0: i32) -> (i32, i32) {
    %c0_i32 = arith.constant 0 : i32
    %c0_i32_0 = arith.constant 0 : i32
    return %arg0, %c0_i32 : i32, i32
  }
}

</mosaic_0001>

<llo_original>
// kernel: linear_sigmoid.1
$region0: #{linear_sigmoid.1}
  #allocation0 [shape = 'u32[]', space=smem, size = 0x4, offset = 0x4, fixed_abs, tag = 'smem constant byte address 0x4 - core index']
  #allocation1 [shape = 'u32[72,128]{1,0:T(1,128)}', space=vmem, size = 0x9000, scoped, tag = 'internal scratch']
  %s0 = inlined_call_operand.vmem [shape: f32[2], index: 0, kind: input, shape index: {}]
  %s1 = inlined_call_operand.vmem [shape: f32[1,512], index: 1, kind: input, shape index: {}]
  %s2 = inlined_call_operand.vmem [shape: f32[1,512], index: 2, kind: output, shape index: {}]
  %s3 = sld [smem:[#allocation0]]
  $region22: #{linear_sigmoid.1} parent=0
    _
  %s5 = ssub.s32 1, %s3
  %s6 = scalar_select 0, %s5, %s3
  $region1: #{linear_sigmoid.1} parent=0
    #allocation2 [shape = 'u8[512]{0}', space=smem, size = 0x200, scoped, tag = 'input window, operand 0, single buffered']
    #allocation3 [shape = 's32[1]{0}', space=sflag, size = 0x4, scoped, tag = 'scoped memory for linear_sigmoid.1']
    %7 = vsyncpa [#allocation3], 0
    // Predicated region
    $region2: #{linear_sigmoid.1} parent=1 // pred_check
      _
    $region3: #{linear_sigmoid.1} parent=1 // pred_check_branch
      %9 = sbr.rel (0) target = $region5
    $region4: #{linear_sigmoid.1} parent=1 // pred_region
      %11 = vsyncadd [#allocation3], 0
      %s13 = sshll.u32 %s0, 4
      %s14 = int_to_ptr.vmem [resolvable:$true] %s13
      %16 = dma.vmem_to_smem %s14, 16, [#allocation2], [#allocation3]
    $region5: #{linear_sigmoid.1} parent=1 // pred_fallthru
      _
    // Predicated region
    $region6: #{linear_sigmoid.1} parent=1 // pred_check
      _
    $region7: #{linear_sigmoid.1} parent=1 // pred_check_branch
      %18 = sbr.rel (0) target = $region9
    $region8: #{linear_sigmoid.1} parent=1 // pred_region
      _
    $region9: #{linear_sigmoid.1} parent=1 // pred_fallthru
      _
    // Predicated region
    $region10: #{linear_sigmoid.1} parent=1 // pred_check
      _
    $region11: #{linear_sigmoid.1} parent=1 // pred_check_branch
      %20 = sbr.rel (0) target = $region13
    $region12: #{linear_sigmoid.1} parent=1 // pred_region
      %22 = dma.done [#allocation3], 16
    $region13: #{linear_sigmoid.1} parent=1 // pred_fallthru
      _
    %23 = sfence
    %s24 = sld [smem:[#allocation2]]
    %s25 = sld [smem:[#allocation2 + $0x1]]
    %v26 = vld [vmem:[%s1] sm:$0xf]
    %v27 = vstv %s24
    %v28 = vmul.f32 %v26, %v27
    %v29 = vstv %s25
    %v30 = vadd.f32 %v28, %v29
    %v31 = vxor.u32 %v30, 2147483648
    %v32 = vmul.f32 %v31, 1.442695
    %v33 = vpow.pop %v32
    %v34 = vadd.f32 %v33, 1.0
    %v35 = vrcp.pop %v34
    %v36 = vmul.f32 %v34, %v35
    %v37 = vsub.f32 1.0, %v36
    %v38 = vmul.f32 %v35, %v37
    %v39 = vadd.f32 %v35, %v38
    %vm40 = vweird.f32 %v34
    %vm41 = vweird.f32 %v35
    %vm42 = vmor %vm40, %vm41
    %v43 = vsel %vm42, %v35, %v39
    %v44 = vand.u32 2147483647, %v34
    %vm45 = vcmp.eq.f32.partialorder %v44, 8.507059e+37
    %v46 = vand.u32 %v34, 2147483648
    %v47 = vor.u32 1.1754944e-38, %v46
    %v48 = vsel %vm45, %v47, %v43
    %v49 = vmul.f32 1.0, %v48
    %v50 = vlaneseq
    %vm51 = vcmp.ge.s32.totalorder %v50, 0
    %vm52 = vcmp.lt.s32.totalorder %v50, 512
    %vm53 = vmand %vm51, %vm52
    %54 = vst.msk [vmem:[%s2] sm:$0xf] %vm53, %v49
    // Predicated region
    $region14: #{linear_sigmoid.1} parent=1 // pred_check
      _
    $region15: #{linear_sigmoid.1} parent=1 // pred_check_branch
      %56 = sbr.rel (0) target = $region17
    $region16: #{linear_sigmoid.1} parent=1 // pred_region
      _
    $region17: #{linear_sigmoid.1} parent=1 // pred_fallthru
      _
    // Predicated region
    $region18: #{linear_sigmoid.1} parent=1 // pred_check
      _
    $region19: #{linear_sigmoid.1} parent=1 // pred_check_branch
      %58 = sbr.rel (0) target = $region21
    $region20: #{linear_sigmoid.1} parent=1 // pred_region
      _
    $region21: #{linear_sigmoid.1} parent=1 // pred_fallthru
      _
    %59 = vsyncpa [#allocation3], 1

</llo_original>
